<compile_context>
chip_gen: v5e
topology: v5e:2x2
jax: 0.10.0
libtpu: 0.0.40
codegen_flags: <defaults>
</compile_context>

<pallas_src>
import jax
import jax.numpy as jnp
from jax.experimental import pallas as pl
from jax.experimental.pallas import tpu as pltpu


def _round_up(a: int, m: int) -> int:
    return (a + m - 1) // m * m


def _row_sum_kernel(x_ref, o_ref, acc_ref):
    """Accumulate per-row sums of a (TB_ROWS, TILE_HW) tile into f32 scratch."""
    k = pl.program_id(1)

    @pl.when(k == 0)
    def _():
        acc_ref[...] = jnp.zeros_like(acc_ref)

    # f32-accumulated cross-lane reduction (XLU); no explicit astype pass.
    acc_ref[...] += jnp.sum(x_ref[...], axis=1, keepdims=True, dtype=jnp.float32)

    @pl.when(k == pl.num_programs(1) - 1)
    def _():
        o_ref[...] = acc_ref[...].astype(o_ref.dtype)


def l_color(x, *, max_tile_bytes=2 * 1024 * 1024):
    """x: (B, 3, H, W) NCHW array. Returns (B, 1, 1, 1), matching PyTorch L_color."""
    b, c, h, w = x.shape
    assert c == 3, "L_color expects 3 channels (RGB)"
    hw = h * w
    rows = b * c
    itemsize = jnp.dtype(x.dtype).itemsize

    # ---- tiling choices -------------------------------------------------
    # Rows: fill sublanes (multiple of 8); cap so row-padding waste stays small.
    tb_rows = min(_round_up(rows, 8), 64)
    rows_p = _round_up(rows, tb_rows)

    # Lanes: multiple of 128, sized so one block <= max_tile_bytes
    # (double-buffered it stays well under every generation's scoped VMEM).
    tile_elems = max(128, (max_tile_bytes // (tb_rows * itemsize)) // 128 * 128)
    tile_hw = min(tile_elems, _round_up(hw, 128))
    hw_p = _round_up(hw, tile_hw)

    # ---- layout + zero padding (zeros don't affect sums) ----------------
    x2 = x.reshape(rows, hw)
    pad_r, pad_c = rows_p - rows, hw_p - hw
    if pad_r or pad_c:
        x2 = jnp.pad(x2, ((0, pad_r), (0, pad_c)))

    grid = (rows_p // tb_rows, hw_p // tile_hw)

    sums = pl.pallas_call(
        _row_sum_kernel,
        out_shape=jax.ShapeDtypeStruct((rows_p, 1), jnp.float32),
        grid_spec=pltpu.PrefetchScalarGridSpec(
            num_scalar_prefetch=0,
            grid=grid,
            in_specs=[pl.BlockSpec((tb_rows, tile_hw), lambda i, k: (i, k))],
            out_specs=pl.BlockSpec((tb_rows, 1), lambda i, k: (i, 0)),
            scratch_shapes=[pltpu.VMEM((tb_rows, 1), jnp.float32)],
        ),
        compiler_params=pltpu.CompilerParams(
            dimension_semantics=("parallel", "arbitrary"),
            vmem_limit_bytes=32 * 1024 * 1024,
        ),
        cost_estimate=pl.CostEstimate(
            flops=int(rows_p * hw_p),
            transcendentals=0,
            bytes_accessed=int(rows_p * hw_p * itemsize + rows_p * 4),
        ),
    )(x2)

    # ---- tiny epilogue on (B, 3) means (kept in f32) ---------------------
    means = sums[:rows, 0].reshape(b, c) / jnp.float32(hw)
    mr, mg, mb = means[:, 0], means[:, 1], means[:, 2]
    drg = (mr - mg) ** 2
    drb = (mr - mb) ** 2
    dgb = (mb - mg) ** 2
    k = jnp.sqrt(drg * drg + drb * drb + dgb * dgb)
    return k.reshape(b, 1, 1, 1).astype(x.dtype)


def _l_color_ref(x):
    """Pure-JAX reference matching the PyTorch forward."""
    mean_rgb = jnp.mean(x, axis=(2, 3), keepdims=True)   # (B, 3, 1, 1)
    mr = mean_rgb[:, 0:1]
    mg = mean_rgb[:, 1:2]
    mb = mean_rgb[:, 2:3]
    drg = (mr - mg) ** 2
    drb = (mr - mb) ** 2
    dgb = (mb - mg) ** 2
    return jnp.sqrt(drg ** 2 + drb ** 2 + dgb ** 2)


if __name__ == "__main__":
    key = jax.random.PRNGKey(0)

    # Case 1: nicely aligned small shape (B=2, C=3, 16x16).
    x1 = jax.random.uniform(key, (2, 3, 16, 16), dtype=jnp.float32)
    k1 = jax.block_until_ready(l_color(x1))
    k1_ref = _l_color_ref(x1)
    assert k1.shape == (2, 1, 1, 1)
    assert jnp.allclose(k1, k1_ref, atol=1e-6, rtol=1e-5), (k1, k1_ref)

    # Case 2: unaligned spatial extent -> exercises the zero-padding path.
    x2 = jax.random.uniform(jax.random.PRNGKey(1), (2, 3, 17, 19), dtype=jnp.float32)
    k2 = jax.block_until_ready(l_color(x2))
    k2_ref = _l_color_ref(x2)
    assert k2.shape == (2, 1, 1, 1)
    assert jnp.allclose(k2, k2_ref, atol=1e-6, rtol=1e-5), (k2, k2_ref)

    print("KERNEL_OK")
</pallas_src>

<mosaic_0001>
module attributes {stable_mosaic.version = 11 : i64} {
  func.func @_row_sum_kernel(%arg0: i32, %arg1: i32, %arg2: memref<8x256xf32, #tpu.memory_space<vmem>>, %arg3: memref<8x1xf32, #tpu.memory_space<vmem>>, %arg4: memref<8x1xf32, #tpu.memory_space<vmem>>) attributes {dimension_semantics = [#tpu.dimension_semantics<parallel>, #tpu.dimension_semantics<arbitrary>], iteration_bounds = array<i64: 1, 1>, scalar_prefetch = 0 : i64, scratch_operands = 1 : i64, tpu.core_type = #tpu.core_type<tc>, window_params = [{transform_indices = @transform_0, window_bounds = array<i64: 8, 256>}, {transform_indices = @transform_1, window_bounds = array<i64: 8, 1>}]} {
    %c0_i32 = arith.constant 0 : i32
    %0 = arith.cmpi eq, %arg1, %c0_i32 : i32
    %1 = arith.extui %0 : i1 to i32
    %c0_i32_0 = arith.constant 0 : i32
    %2 = arith.cmpi ne, %1, %c0_i32_0 : i32
    scf.if %2 {
      %cst_8 = arith.constant 0.000000e+00 : f32
      %12 = vector.broadcast %cst_8 : f32 to vector<8x1xf32>
      %c0_9 = arith.constant 0 : index
      %c0_10 = arith.constant 0 : index
      %13 = vector.load %arg4[%c0_9, %c0_10] : memref<8x1xf32, #tpu.memory_space<vmem>>, vector<8x1xf32>
      tpu.vector_store %arg4[%c0_9, %c0_10], %12 {strides = array<i32>} : memref<8x1xf32, #tpu.memory_space<vmem>>, vector<8x1xf32>,
    } else {
    }
    %c0 = arith.constant 0 : index
    %c0_1 = arith.constant 0 : index
    %3 = vector.load %arg4[%c0, %c0_1] : memref<8x1xf32, #tpu.memory_space<vmem>>, vector<8x1xf32>
    %c0_2 = arith.constant 0 : index
    %c0_3 = arith.constant 0 : index
    %4 = vector.load %arg2[%c0_2, %c0_3] : memref<8x256xf32, #tpu.memory_space<vmem>>, vector<8x256xf32>
    %cst = arith.constant dense<0.000000e+00> : vector<8xf32>
    %5 = vector.multi_reduction <add>, %4, %cst [1] : vector<8x256xf32> to vector<8xf32>
    %6 = vector.shape_cast %5 : vector<8xf32> to vector<8x1xf32>
    %7 = arith.addf %3, %6 : vector<8x1xf32>
    %c0_4 = arith.constant 0 : index
    %c0_5 = arith.constant 0 : index
    %8 = vector.load %arg4[%c0_4, %c0_5] : memref<8x1xf32, #tpu.memory_space<vmem>>, vector<8x1xf32>
    tpu.vector_store %arg4[%c0_4, %c0_5], %7 {strides = array<i32>} : memref<8x1xf32, #tpu.memory_space<vmem>>, vector<8x1xf32>,
    %c0_i32_6 = arith.constant 0 : i32
    %9 = arith.cmpi eq, %arg1, %c0_i32_6 : i32
    %10 = arith.extui %9 : i1 to i32
    %c0_i32_7 = arith.constant 0 : i32
    %11 = arith.cmpi ne, %10, %c0_i32_7 : i32
    scf.if %11 {
      %c0_8 = arith.constant 0 : index
      %c0_9 = arith.constant 0 : index
      %12 = vector.load %arg4[%c0_8, %c0_9] : memref<8x1xf32, #tpu.memory_space<vmem>>, vector<8x1xf32>
      %c0_10 = arith.constant 0 : index
      %c0_11 = arith.constant 0 : index
      %13 = vector.load %arg3[%c0_10, %c0_11] : memref<8x1xf32, #tpu.memory_space<vmem>>, vector<8x1xf32>
      tpu.vector_store %arg3[%c0_10, %c0_11], %12 {strides = array<i32>} : memref<8x1xf32, #tpu.memory_space<vmem>>, vector<8x1xf32>,
    } else {
    }
    return
  }
  func.func @transform_0(%arg0: i32, %arg1: i32) -> (i32, i32) {
    %c0_i32 = arith.constant 0 : i32
    return %arg0, %arg1 : i32, i32
  }
  func.func @transform_1(%arg0: i32, %arg1: i32) -> (i32, i32) {
    %c0_i32 = arith.constant 0 : i32
    %c0_i32_0 = arith.constant 0 : i32
    return %arg0, %c0_i32 : i32, i32
  }
}

</mosaic_0001>

<llo_original>
// kernel: tpu_custom_call.1
$region0: #{tpu_custom_call.1}
  #allocation0 [shape = 'u32[]', space=smem, size = 0x4, offset = 0x4, fixed_abs, tag = 'smem constant byte address 0x4 - core index']
  #allocation1 [shape = 'u32[72,128]{1,0:T(1,128)}', space=vmem, size = 0x9000, scoped, tag = 'internal scratch']
  #allocation2 [shape = 'f32[8,1]{1,0:T(8,128)}', space=vmem, size = 0x1000, scoped, tag = 'scratch operand']
  %s0 = inlined_call_operand.hbm [shape: f32[8,256], index: 0, kind: input, shape index: {}]
  %s1 = inlined_call_operand.vmem [shape: f32[8,1], index: 1, kind: output, shape index: {}]
  %s2 = sld [smem:[#allocation0]]
  $region26: #{tpu_custom_call.1} parent=0
    _
  %s4 = ssub.s32 1, %s2
  %s5 = scalar_select 0, %s4, %s2
  $region1: #{tpu_custom_call.1} parent=0
    #allocation3 [shape = 'u8[8192]{0}', space=vmem, size = 0x2000, scoped, tag = 'input window, operand 0, single buffered']
    #allocation4 [shape = 's32[1]{0}', space=sflag, size = 0x4, scoped, tag = 'scoped memory for tpu_custom_call.1']
    %6 = vsyncpa [#allocation4], 0
    // Predicated region
    $region2: #{tpu_custom_call.1} parent=1 // pred_check
      _
    $region3: #{tpu_custom_call.1} parent=1 // pred_check_branch
      %8 = sbr.rel (0) target = $region5
    $region4: #{tpu_custom_call.1} parent=1 // pred_region
      %10 = vsyncadd [#allocation4], 0
      %s12 = sshll.u32 %s0, 4
      %s13 = int_to_ptr.hbm [resolvable:$true] %s12
      %s14 = sshll.u32 [#allocation3], 4
      %s15 = int_to_ptr.vmem [resolvable:$true] %s14
      %17 = dma.hbm_to_vmem [thread:$0]  %s13, 256, %s15, [#allocation4]
    $region5: #{tpu_custom_call.1} parent=1 // pred_fallthru
      _
    // Predicated region
    $region6: #{tpu_custom_call.1} parent=1 // pred_check
      _
    $region7: #{tpu_custom_call.1} parent=1 // pred_check_branch
      %19 = sbr.rel (0) target = $region9
    $region8: #{tpu_custom_call.1} parent=1 // pred_region
      %21 = dma.done [#allocation4], 256
    $region9: #{tpu_custom_call.1} parent=1 // pred_fallthru
      _
    %p22 = scmp.eq.s32.totalorder 0, 0
    // Predicated region
    $region10: #{tpu_custom_call.1} parent=1 // pred_check
      %p23 = pneg %p22
    $region11: #{tpu_custom_call.1} parent=1 // pred_check_branch
      %25 = sbr.rel (%p23) target = $region13
    $region12: #{tpu_custom_call.1} parent=1 // pred_region
      %vm26 = vcmask 7168
      %27 = vst.msk [vmem:[#allocation2] sm:$0xff] %vm26, 0.0
    $region13: #{tpu_custom_call.1} parent=1 // pred_fallthru
      _
    %v28 = vld [vmem:[#allocation2] sm:$0xff]
    %v29 = vld [vmem:[#allocation3] sm:$0xff]
    %v30 = vld [vmem:[#allocation3 + $0x8] sm:$0xff]
    %v31 = vadd.f32 %v29, %v30
    %32 = vadd.xlane.f32.xlu0 %v31
    %v33 = vpop.xlane.xlu0 %32
    %v34 = vadd.f32 %v28, %v33
    %vm35 = vcmask 7168
    %36 = vst.msk [vmem:[#allocation2] sm:$0xff] %vm35, %v34
    // Predicated region
    $region14: #{tpu_custom_call.1} parent=1 // pred_check
      %p37 = pneg %p22
    $region15: #{tpu_custom_call.1} parent=1 // pred_check_branch
      %39 = sbr.rel (%p37) target = $region17
    $region16: #{tpu_custom_call.1} parent=1 // pred_region
      %v40 = vld [vmem:[#allocation2] sm:$0xff]
      %41 = vst.msk [vmem:[%s1] sm:$0xff] %vm35, %v40
    $region17: #{tpu_custom_call.1} parent=1 // pred_fallthru
      _
    // Predicated region
    $region18: #{tpu_custom_call.1} parent=1 // pred_check
      _
    $region19: #{tpu_custom_call.1} parent=1 // pred_check_branch
      %43 = sbr.rel (0) target = $region21
    $region20: #{tpu_custom_call.1} parent=1 // pred_region
      _
    $region21: #{tpu_custom_call.1} parent=1 // pred_fallthru
      _
    // Predicated region
    $region22: #{tpu_custom_call.1} parent=1 // pred_check
      _
    $region23: #{tpu_custom_call.1} parent=1 // pred_check_branch
      %45 = sbr.rel (0) target = $region25
    $region24: #{tpu_custom_call.1} parent=1 // pred_region
      _
    $region25: #{tpu_custom_call.1} parent=1 // pred_fallthru
      _
    %46 = vsyncpa [#allocation4], 1

</llo_original>
